<compile_context>
chip_gen: v7x
topology: tpu7x:2x2x1
jax: 0.10.0
libtpu: 0.0.40
codegen_flags: <defaults>
</compile_context>

<pallas_src>
import functools

import jax
import jax.numpy as jnp
from jax import lax
from jax.experimental import pallas as pl
from jax.experimental.pallas import tpu as pltpu

_LANE = 128


def _round_up(x, m):
    return ((x + m - 1) // m) * m


def _mlp_kernel(x_ref, w1_ref, aff1_ref, w2_ref, aff2_ref, w3_ref, b3_ref,
                o_ref, *, hid, eps):
    x = x_ref[...]
    aff1 = aff1_ref[...]  # rows: 0=bias, 1=gamma, 2=beta (rest zero-pad)
    aff2 = aff2_ref[...]

    inv_n = 1.0 / hid  # divide by the REAL hidden width (matches nn.LayerNorm)

    def layernorm(h, gamma, beta):
        # One-pass stats: padded lanes of h are exactly zero (padded weight
        # columns and biases are zero), so plain sums over the padded width
        # are already the sums over the real width.
        mu = jnp.sum(h, axis=-1, keepdims=True) * inv_n
        ex2 = jnp.sum(h * h, axis=-1, keepdims=True) * inv_n
        var = ex2 - mu * mu
        inv = lax.rsqrt(var + eps)                 # EUP slot, effectively free
        # padded gamma/beta are zero -> padded output lanes stay exactly zero
        return (h - mu) * inv * gamma + beta

    # Layer 1: Linear + LayerNorm + ReLU   (bf16 operands, f32 MXU accumulation)
    h = jnp.dot(x.astype(w1_ref.dtype), w1_ref[...],
                preferred_element_type=jnp.float32) + aff1[0:1, :]
    h = jnp.maximum(layernorm(h, aff1[1:2, :], aff1[2:3, :]), 0.0)

    # Layer 2: Linear + LayerNorm + ReLU
    h = jnp.dot(h.astype(w2_ref.dtype), w2_ref[...],
                preferred_element_type=jnp.float32) + aff2[0:1, :]
    h = jnp.maximum(layernorm(h, aff2[1:2, :], aff2[2:3, :]), 0.0)

    # Layer 3: Linear
    out = jnp.dot(h.astype(w3_ref.dtype), w3_ref[...],
                  preferred_element_type=jnp.float32) + b3_ref[...]
    o_ref[...] = out.astype(o_ref.dtype)


def _vmem_limit_bytes():
    cap = 64 * 1024 * 1024  # conservative fallback (v7x per-TC VMEM)
    try:
        cap = int(pltpu.get_tpu_info().vmem_capacity_bytes)
    except Exception:
        pass
    # ~54 MiB on v7x (64 MiB), ~108 MiB capped to 112 MiB on v5e/v6e (128 MiB)
    return min(int(cap * 0.85), 112 * 1024 * 1024)


def mlp_pallas(x, params, *, tile_rows=512, compute_dtype=jnp.bfloat16,
               eps=1e-5):
    """x: [..., input_channel] -> [..., out_dim]"""
    (w1, b1, g1, be1, w2, b2, g2, be2, w3, b3) = params
    in_dim, hid = w1.shape
    out_dim = w3.shape[1]
    assert x.shape[-1] == in_dim

    out_dtype = x.dtype
    lead_shape = x.shape[:-1]
    xf = x.reshape(-1, in_dim).astype(compute_dtype)   # halve x DMA + no VPU cast
    n = xf.shape[0]

    # Hidden dim: lane-dense (zero) padding -> unmasked stores, full MXU N.
    hid_p = _round_up(hid, _LANE)
    # Output dim: pad only when a sizable fraction of a lane; tiny out_dims are
    # stored unpadded (fewer HBM bytes, no XLA slice afterwards).
    if out_dim % _LANE == 0 or out_dim < 64:
        out_p = out_dim
    else:
        out_p = _round_up(out_dim, _LANE)

    def pad2(a, rows, cols):
        return jnp.pad(a, ((0, rows - a.shape[0]), (0, cols - a.shape[1])))

    w1p = pad2(w1, in_dim, hid_p).astype(compute_dtype)
    w2p = pad2(w2, hid_p, hid_p).astype(compute_dtype)
    w3p = pad2(w3, hid_p, out_p).astype(compute_dtype)

    # Consolidate bias/gamma/beta per layer into one (8, hid_p) f32 block
    # (rows 0/1/2; rest zero) -> fewer tiny pipelined inputs; LN math in f32.
    def affine_block(b, g, be, d_p):
        a = jnp.zeros((8, d_p), jnp.float32)
        a = a.at[0, : b.shape[0]].set(b.astype(jnp.float32))
        a = a.at[1, : g.shape[0]].set(g.astype(jnp.float32))
        a = a.at[2, : be.shape[0]].set(be.astype(jnp.float32))
        return a

    aff1 = affine_block(b1, g1, be1, hid_p)
    aff2 = affine_block(b2, g2, be2, hid_p)
    b3p = jnp.pad(b3.astype(jnp.float32), ((0, out_p - out_dim),))[None, :]

    # Row tile: sub-32-bit dtypes pack rows per sublane -> min 16 (bf16) / 32
    # (8-bit) rows; 8 for f32. Tile as large as tile_rows / the problem allows.
    row_align = 8 * max(4 // jnp.dtype(d).itemsize
                        for d in (compute_dtype, out_dtype))
    tr = min(_round_up(tile_rows, row_align), _round_up(n, row_align))
    steps = pl.cdiv(n, tr)
    # v7x megacore: give the second TensorCore work and balance block sizes.
    if steps == 1 and n > row_align:
        steps = 2
    if steps > 1:
        tr = max(row_align, _round_up(pl.cdiv(n, steps), row_align))

    # Resident-VMEM accounting: weights/affines at Buffered(1) (single copy),
    # double-buffered x/out row tiles, plus a few f32 (tr, hid_p) intermediates.
    c_bytes = jnp.dtype(compute_dtype).itemsize
    o_bytes = jnp.dtype(out_dtype).itemsize
    weight_bytes = ((in_dim * hid_p + hid_p * hid_p + hid_p * out_p) * c_bytes
                    + (2 * 8 * hid_p + out_p) * 4)
    vmem_limit = _vmem_limit_bytes()

    def resident(tr_):
        io = tr_ * in_dim * c_bytes + tr_ * out_p * o_bytes
        scratch = 4 * tr_ * hid_p * 4
        return weight_bytes + 2 * io + scratch

    while tr > row_align and resident(tr) > int(vmem_limit * 0.9):
        tr = max(row_align, _round_up(tr // 2, row_align))
    if resident(tr) > vmem_limit:
        # TODO(synk): for very large hidden dims (esp. v7x's 64 MiB VMEM),
        # K-tile w2/w3 over a trailing "arbitrary" reduction grid axis with an
        # f32 accumulator scratch instead of keeping them fully resident.
        raise ValueError("MLP weights too large to keep resident in VMEM; "
                         "K-tiling fallback not implemented.")

    grid = (pl.cdiv(n, tr),)

    def const_spec(shape):
        nd = len(shape)
        # Constant block every grid step: single buffer (no double-buffering).
        return pl.BlockSpec(shape, lambda *_: (0,) * nd,
                            pipeline_mode=pl.Buffered(1))

    out = pl.pallas_call(
        functools.partial(_mlp_kernel, hid=hid, eps=eps),
        out_shape=jax.ShapeDtypeStruct((n, out_p), out_dtype),
        grid_spec=pltpu.PrefetchScalarGridSpec(
            num_scalar_prefetch=0,
            grid=grid,
            in_specs=[
                pl.BlockSpec((tr, in_dim), lambda i: (i, 0)),  # x row tile
                const_spec((in_dim, hid_p)),                   # w1
                const_spec((8, hid_p)),                        # b1/g1/be1
                const_spec((hid_p, hid_p)),                    # w2
                const_spec((8, hid_p)),                        # b2/g2/be2
                const_spec((hid_p, out_p)),                    # w3
                const_spec((1, out_p)),                        # b3
            ],
            out_specs=pl.BlockSpec((tr, out_p), lambda i: (i, 0)),
        ),
        compiler_params=pltpu.CompilerParams(
            dimension_semantics=("parallel",),   # row grid -> megacore sharding
            vmem_limit_bytes=vmem_limit,
        ),
    )(xf, w1p, aff1, w2p, aff2, w3p, b3p)

    if out_p != out_dim:
        out = out[:, :out_dim]
    return out.reshape(*lead_shape, out_dim)


def init_mlp_params(key, input_channel, hidden_dim, out_dim, dtype=jnp.float32):
    """Deterministic synthetic init (PyTorch-like uniform for Linear,
    ones/zeros for LayerNorm affine)."""
    ks = jax.random.split(key, 6)

    def linear(kw, kb, fan_in, fan_out):
        bound = 1.0 / jnp.sqrt(fan_in)
        w = jax.random.uniform(kw, (fan_in, fan_out), dtype, -bound, bound)
        b = jax.random.uniform(kb, (fan_out,), dtype, -bound, bound)
        return w, b

    w1, b1 = linear(ks[0], ks[1], input_channel, hidden_dim)
    w2, b2 = linear(ks[2], ks[3], hidden_dim, hidden_dim)
    w3, b3 = linear(ks[4], ks[5], hidden_dim, out_dim)
    g1 = jnp.ones((hidden_dim,), dtype)
    be1 = jnp.zeros((hidden_dim,), dtype)
    g2 = jnp.ones((hidden_dim,), dtype)
    be2 = jnp.zeros((hidden_dim,), dtype)
    return (w1, b1, g1, be1, w2, b2, g2, be2, w3, b3)


def _layernorm_ref(h, gamma, beta, eps=1e-5):
    mu = jnp.mean(h, axis=-1, keepdims=True)
    xc = h - mu
    var = jnp.mean(xc * xc, axis=-1, keepdims=True)
    return xc * lax.rsqrt(var + eps) * gamma + beta


def mlp_reference(x, params):
    (w1, b1, g1, be1, w2, b2, g2, be2, w3, b3) = params
    h = x @ w1 + b1
    h = jnp.maximum(_layernorm_ref(h, g1, be1), 0.0)
    h = h @ w2 + b2
    h = jnp.maximum(_layernorm_ref(h, g2, be2), 0.0)
    return h @ w3 + b3


if __name__ == "__main__":
    key = jax.random.PRNGKey(0)
    k_x, k_p = jax.random.split(key)

    batch, seq = 2, 8
    input_channel, hidden_dim, out_dim = 4, 32, 16

    x = jax.random.normal(k_x, (batch, seq, input_channel), jnp.float32)
    params = init_mlp_params(k_p, input_channel, hidden_dim, out_dim)

    out = jax.block_until_ready(mlp_pallas(x, params))
    ref = mlp_reference(x, params)

    assert out.shape == (batch, seq, out_dim)
    assert out.dtype == x.dtype
    # bf16 matmul operands (f32 accumulation + f32 LayerNorm) -> loose tolerance
    assert jnp.allclose(out, ref, atol=5e-2, rtol=5e-2), "mismatch vs reference"

    print("KERNEL_OK")
</pallas_src>

<mosaic_0001>
module attributes {stable_mosaic.version = 11 : i64} {
  func.func @_mlp_kernel(%arg0: i32, %arg1: memref<16x4xbf16, #tpu.memory_space<vmem>>, %arg2: memref<4x128xbf16, #tpu.memory_space<vmem>>, %arg3: memref<8x128xf32, #tpu.memory_space<vmem>>, %arg4: memref<128x128xbf16, #tpu.memory_space<vmem>>, %arg5: memref<8x128xf32, #tpu.memory_space<vmem>>, %arg6: memref<128x16xbf16, #tpu.memory_space<vmem>>, %arg7: memref<1x16xf32, #tpu.memory_space<vmem>>, %arg8: memref<16x16xf32, #tpu.memory_space<vmem>>) attributes {dimension_semantics = [#tpu.dimension_semantics<parallel>], iteration_bounds = array<i64: 1>, scalar_prefetch = 0 : i64, scratch_operands = 0 : i64, tpu.core_type = #tpu.core_type<tc>, window_params = [{transform_indices = @transform_0, window_bounds = array<i64: 16, 4>}, {pipeline_mode = #tpu.pipeline_mode<synchronous>, transform_indices = @transform_1, window_bounds = array<i64: 4, 128>}, {pipeline_mode = #tpu.pipeline_mode<synchronous>, transform_indices = @transform_2, window_bounds = array<i64: 8, 128>}, {pipeline_mode = #tpu.pipeline_mode<synchronous>, transform_indices = @transform_3, window_bounds = array<i64: 128, 128>}, {pipeline_mode = #tpu.pipeline_mode<synchronous>, transform_indices = @transform_4, window_bounds = array<i64: 8, 128>}, {pipeline_mode = #tpu.pipeline_mode<synchronous>, transform_indices = @transform_5, window_bounds = array<i64: 128, 16>}, {pipeline_mode = #tpu.pipeline_mode<synchronous>, transform_indices = @transform_6, window_bounds = array<i64: 1, 16>}, {transform_indices = @transform_7, window_bounds = array<i64: 16, 16>}]} {
    %c0 = arith.constant 0 : index
    %c0_0 = arith.constant 0 : index
    %0 = vector.load %arg1[%c0, %c0_0] : memref<16x4xbf16, #tpu.memory_space<vmem>>, vector<16x4xbf16>
    %c0_1 = arith.constant 0 : index
    %c0_2 = arith.constant 0 : index
    %1 = vector.load %arg3[%c0_1, %c0_2] : memref<8x128xf32, #tpu.memory_space<vmem>>, vector<8x128xf32>
    %c0_3 = arith.constant 0 : index
    %c0_4 = arith.constant 0 : index
    %2 = vector.load %arg5[%c0_3, %c0_4] : memref<8x128xf32, #tpu.memory_space<vmem>>, vector<8x128xf32>
    %c0_5 = arith.constant 0 : index
    %c0_6 = arith.constant 0 : index
    %3 = vector.load %arg2[%c0_5, %c0_6] : memref<4x128xbf16, #tpu.memory_space<vmem>>, vector<4x128xbf16>
    %cst = arith.constant dense<0.000000e+00> : vector<16x128xf32>
    %4 = tpu.matmul %0, %3, %cst {dimension_numbers = #tpu.dot_dimension_numbers<[1], [0], [0], [1], [0, 0, 1, 1], [], []>} : vector<16x4xbf16>, vector<4x128xbf16>, vector<16x128xf32> -> vector<16x128xf32>
    %5 = vector.extract_strided_slice %1 {offsets = [0, 0], sizes = [1, 128], strides = [1, 1]} : vector<8x128xf32> to vector<1x128xf32>
    %6 = vector.broadcast %5 : vector<1x128xf32> to vector<16x128xf32>
    %7 = arith.addf %4, %6 : vector<16x128xf32>
    %8 = vector.extract_strided_slice %1 {offsets = [1, 0], sizes = [1, 128], strides = [1, 1]} : vector<8x128xf32> to vector<1x128xf32>
    %9 = vector.extract_strided_slice %1 {offsets = [2, 0], sizes = [1, 128], strides = [1, 1]} : vector<8x128xf32> to vector<1x128xf32>
    %cst_7 = arith.constant dense<0.000000e+00> : vector<16xf32>
    %10 = vector.multi_reduction <add>, %7, %cst_7 [1] : vector<16x128xf32> to vector<16xf32>
    %11 = vector.shape_cast %10 : vector<16xf32> to vector<16x1xf32>
    %cst_8 = arith.constant 3.125000e-02 : f32
    %12 = vector.broadcast %cst_8 : f32 to vector<16x1xf32>
    %13 = arith.mulf %11, %12 : vector<16x1xf32>
    %14 = arith.mulf %7, %7 : vector<16x128xf32>
    %cst_9 = arith.constant dense<0.000000e+00> : vector<16xf32>
    %15 = vector.multi_reduction <add>, %14, %cst_9 [1] : vector<16x128xf32> to vector<16xf32>
    %16 = vector.shape_cast %15 : vector<16xf32> to vector<16x1xf32>
    %cst_10 = arith.constant 3.125000e-02 : f32
    %17 = vector.broadcast %cst_10 : f32 to vector<16x1xf32>
    %18 = arith.mulf %16, %17 : vector<16x1xf32>
    %19 = arith.mulf %13, %13 : vector<16x1xf32>
    %20 = arith.subf %18, %19 : vector<16x1xf32>
    %cst_11 = arith.constant 9.99999974E-6 : f32
    %21 = vector.broadcast %cst_11 : f32 to vector<16x1xf32>
    %22 = arith.addf %20, %21 : vector<16x1xf32>
    %23 = math.rsqrt %22 : vector<16x1xf32>
    %24 = vector.broadcast %13 : vector<16x1xf32> to vector<16x128xf32>
    %25 = arith.subf %7, %24 : vector<16x128xf32>
    %26 = vector.broadcast %23 : vector<16x1xf32> to vector<16x128xf32>
    %27 = arith.mulf %25, %26 : vector<16x128xf32>
    %28 = vector.broadcast %8 : vector<1x128xf32> to vector<16x128xf32>
    %29 = arith.mulf %27, %28 : vector<16x128xf32>
    %30 = vector.broadcast %9 : vector<1x128xf32> to vector<16x128xf32>
    %31 = arith.addf %29, %30 : vector<16x128xf32>
    %cst_12 = arith.constant 0.000000e+00 : f32
    %32 = vector.broadcast %cst_12 : f32 to vector<16x128xf32>
    %33 = arith.maximumf %31, %32 : vector<16x128xf32>
    %34 = arith.truncf %33 : vector<16x128xf32> to vector<16x128xbf16>
    %c0_13 = arith.constant 0 : index
    %c0_14 = arith.constant 0 : index
    %35 = vector.load %arg4[%c0_13, %c0_14] : memref<128x128xbf16, #tpu.memory_space<vmem>>, vector<128x128xbf16>
    %cst_15 = arith.constant dense<0.000000e+00> : vector<16x128xf32>
    %36 = tpu.matmul %34, %35, %cst_15 {dimension_numbers = #tpu.dot_dimension_numbers<[1], [0], [0], [1], [0, 0, 1, 1], [], []>} : vector<16x128xbf16>, vector<128x128xbf16>, vector<16x128xf32> -> vector<16x128xf32>
    %37 = vector.extract_strided_slice %2 {offsets = [0, 0], sizes = [1, 128], strides = [1, 1]} : vector<8x128xf32> to vector<1x128xf32>
    %38 = vector.broadcast %37 : vector<1x128xf32> to vector<16x128xf32>
    %39 = arith.addf %36, %38 : vector<16x128xf32>
    %40 = vector.extract_strided_slice %2 {offsets = [1, 0], sizes = [1, 128], strides = [1, 1]} : vector<8x128xf32> to vector<1x128xf32>
    %41 = vector.extract_strided_slice %2 {offsets = [2, 0], sizes = [1, 128], strides = [1, 1]} : vector<8x128xf32> to vector<1x128xf32>
    %cst_16 = arith.constant dense<0.000000e+00> : vector<16xf32>
    %42 = vector.multi_reduction <add>, %39, %cst_16 [1] : vector<16x128xf32> to vector<16xf32>
    %43 = vector.shape_cast %42 : vector<16xf32> to vector<16x1xf32>
    %cst_17 = arith.constant 3.125000e-02 : f32
    %44 = vector.broadcast %cst_17 : f32 to vector<16x1xf32>
    %45 = arith.mulf %43, %44 : vector<16x1xf32>
    %46 = arith.mulf %39, %39 : vector<16x128xf32>
    %cst_18 = arith.constant dense<0.000000e+00> : vector<16xf32>
    %47 = vector.multi_reduction <add>, %46, %cst_18 [1] : vector<16x128xf32> to vector<16xf32>
    %48 = vector.shape_cast %47 : vector<16xf32> to vector<16x1xf32>
    %cst_19 = arith.constant 3.125000e-02 : f32
    %49 = vector.broadcast %cst_19 : f32 to vector<16x1xf32>
    %50 = arith.mulf %48, %49 : vector<16x1xf32>
    %51 = arith.mulf %45, %45 : vector<16x1xf32>
    %52 = arith.subf %50, %51 : vector<16x1xf32>
    %cst_20 = arith.constant 9.99999974E-6 : f32
    %53 = vector.broadcast %cst_20 : f32 to vector<16x1xf32>
    %54 = arith.addf %52, %53 : vector<16x1xf32>
    %55 = math.rsqrt %54 : vector<16x1xf32>
    %56 = vector.broadcast %45 : vector<16x1xf32> to vector<16x128xf32>
    %57 = arith.subf %39, %56 : vector<16x128xf32>
    %58 = vector.broadcast %55 : vector<16x1xf32> to vector<16x128xf32>
    %59 = arith.mulf %57, %58 : vector<16x128xf32>
    %60 = vector.broadcast %40 : vector<1x128xf32> to vector<16x128xf32>
    %61 = arith.mulf %59, %60 : vector<16x128xf32>
    %62 = vector.broadcast %41 : vector<1x128xf32> to vector<16x128xf32>
    %63 = arith.addf %61, %62 : vector<16x128xf32>
    %cst_21 = arith.constant 0.000000e+00 : f32
    %64 = vector.broadcast %cst_21 : f32 to vector<16x128xf32>
    %65 = arith.maximumf %63, %64 : vector<16x128xf32>
    %66 = arith.truncf %65 : vector<16x128xf32> to vector<16x128xbf16>
    %c0_22 = arith.constant 0 : index
    %c0_23 = arith.constant 0 : index
    %67 = vector.load %arg6[%c0_22, %c0_23] : memref<128x16xbf16, #tpu.memory_space<vmem>>, vector<128x16xbf16>
    %cst_24 = arith.constant dense<0.000000e+00> : vector<16x16xf32>
    %68 = tpu.matmul %66, %67, %cst_24 {dimension_numbers = #tpu.dot_dimension_numbers<[1], [0], [0], [1], [0, 0, 1, 1], [], []>} : vector<16x128xbf16>, vector<128x16xbf16>, vector<16x16xf32> -> vector<16x16xf32>
    %c0_25 = arith.constant 0 : index
    %c0_26 = arith.constant 0 : index
    %69 = vector.load %arg7[%c0_25, %c0_26] : memref<1x16xf32, #tpu.memory_space<vmem>>, vector<1x16xf32>
    %70 = vector.broadcast %69 : vector<1x16xf32> to vector<16x16xf32>
    %71 = arith.addf %68, %70 : vector<16x16xf32>
    %c0_27 = arith.constant 0 : index
    %c0_28 = arith.constant 0 : index
    %72 = vector.load %arg8[%c0_27, %c0_28] : memref<16x16xf32, #tpu.memory_space<vmem>>, vector<16x16xf32>
    tpu.vector_store %arg8[%c0_27, %c0_28], %71 {strides = array<i32>} : memref<16x16xf32, #tpu.memory_space<vmem>>, vector<16x16xf32>,
    return
  }
  func.func @transform_0(%arg0: i32) -> (i32, i32) {
    %c0_i32 = arith.constant 0 : i32
    %c0_i32_0 = arith.constant 0 : i32
    return %arg0, %c0_i32 : i32, i32
  }
  func.func @transform_1(%arg0: i32) -> (i32, i32) {
    %c0_i32 = arith.constant 0 : i32
    %c0_i32_0 = arith.constant 0 : i32
    %c0_i32_1 = arith.constant 0 : i32
    return %c0_i32, %c0_i32_0 : i32, i32
  }
  func.func @transform_2(%arg0: i32) -> (i32, i32) {
    %c0_i32 = arith.constant 0 : i32
    %c0_i32_0 = arith.constant 0 : i32
    %c0_i32_1 = arith.constant 0 : i32
    return %c0_i32, %c0_i32_0 : i32, i32
  }
  func.func @transform_3(%arg0: i32) -> (i32, i32) {
    %c0_i32 = arith.constant 0 : i32
    %c0_i32_0 = arith.constant 0 : i32
    %c0_i32_1 = arith.constant 0 : i32
    return %c0_i32, %c0_i32_0 : i32, i32
  }
  func.func @transform_4(%arg0: i32) -> (i32, i32) {
    %c0_i32 = arith.constant 0 : i32
    %c0_i32_0 = arith.constant 0 : i32
    %c0_i32_1 = arith.constant 0 : i32
    return %c0_i32, %c0_i32_0 : i32, i32
  }
  func.func @transform_5(%arg0: i32) -> (i32, i32) {
    %c0_i32 = arith.constant 0 : i32
    %c0_i32_0 = arith.constant 0 : i32
    %c0_i32_1 = arith.constant 0 : i32
    return %c0_i32, %c0_i32_0 : i32, i32
  }
  func.func @transform_6(%arg0: i32) -> (i32, i32) {
    %c0_i32 = arith.constant 0 : i32
    %c0_i32_0 = arith.constant 0 : i32
    %c0_i32_1 = arith.constant 0 : i32
    return %c0_i32, %c0_i32_0 : i32, i32
  }
  func.func @transform_7(%arg0: i32) -> (i32, i32) {
    %c0_i32 = arith.constant 0 : i32
    %c0_i32_0 = arith.constant 0 : i32
    return %arg0, %c0_i32 : i32, i32
  }
}

</mosaic_0001>

<llo_original>
// kernel: tpu_custom_call.1
$region0: #{tpu_custom_call.1}
  #allocation0 [shape = 'u32[]', space=smem, size = 0x4, offset = 0x4, fixed_abs, tag = 'smem constant byte address 0x4 - core index']
  #allocation1 [shape = 'u32[144,128]{1,0:T(1,128)}', space=vmem, size = 0x12000, scoped, tag = 'internal scratch']
  %s0 = inlined_call_operand.vmem [shape: bf16[16,4], index: 0, kind: input, shape index: {}]
  %s1 = inlined_call_operand.vmem [shape: bf16[4,128], index: 1, kind: input, shape index: {}]
  %s2 = inlined_call_operand.vmem [shape: f32[8,128], index: 2, kind: input, shape index: {}]
  %s3 = inlined_call_operand.vmem [shape: bf16[128,128], index: 3, kind: input, shape index: {}]
  %s4 = inlined_call_operand.vmem [shape: f32[8,128], index: 4, kind: input, shape index: {}]
  %s5 = inlined_call_operand.vmem [shape: bf16[128,16], index: 5, kind: input, shape index: {}]
  %s6 = inlined_call_operand.vmem [shape: f32[1,16], index: 6, kind: input, shape index: {}]
  %s7 = inlined_call_operand.hbm [shape: f32[16,16], index: 7, kind: output, shape index: {}]
  %s8 = sld [smem:[#allocation0]]
  $region38: #{tpu_custom_call.1} parent=0
    _
  %s10 = ssub.s32 1, %s8
  %s11 = scalar_select 0, %s10, %s8
  $region1: #{tpu_custom_call.1} parent=0
    #allocation2 [shape = 'u8[8192]{0}', space=vmem, size = 0x2000, scoped, tag = 'output window, operand 0, single buffered']
    #allocation3 [shape = 's32[1]{0}', space=sflag, size = 0x4, scoped, tag = 'scoped memory for tpu_custom_call.1']
    %12 = vsyncpa [#allocation3], 0
    // Predicated region
    $region2: #{tpu_custom_call.1} parent=1 // pred_check
      _
    $region3: #{tpu_custom_call.1} parent=1 // pred_check_branch
      %14 = sbr.rel (0) target = $region5
    $region4: #{tpu_custom_call.1} parent=1 // pred_region
      _
    $region5: #{tpu_custom_call.1} parent=1 // pred_fallthru
      _
    // Predicated region
    $region6: #{tpu_custom_call.1} parent=1 // pred_check
      _
    $region7: #{tpu_custom_call.1} parent=1 // pred_check_branch
      %16 = sbr.rel (0) target = $region9
    $region8: #{tpu_custom_call.1} parent=1 // pred_region
      _
    $region9: #{tpu_custom_call.1} parent=1 // pred_fallthru
      _
    // Predicated region
    $region10: #{tpu_custom_call.1} parent=1 // pred_check
      _
    $region11: #{tpu_custom_call.1} parent=1 // pred_check_branch
      %18 = sbr.rel (0) target = $region13
    $region12: #{tpu_custom_call.1} parent=1 // pred_region
      _
    $region13: #{tpu_custom_call.1} parent=1 // pred_fallthru
      _
    // Predicated region
    $region14: #{tpu_custom_call.1} parent=1 // pred_check
      _
    $region15: #{tpu_custom_call.1} parent=1 // pred_check_branch
      %20 = sbr.rel (0) target = $region17
    $region16: #{tpu_custom_call.1} parent=1 // pred_region
      _
    $region17: #{tpu_custom_call.1} parent=1 // pred_fallthru
      _
    // Predicated region
    $region18: #{tpu_custom_call.1} parent=1 // pred_check
      _
    $region19: #{tpu_custom_call.1} parent=1 // pred_check_branch
      %22 = sbr.rel (0) target = $region21
    $region20: #{tpu_custom_call.1} parent=1 // pred_region
      _
    $region21: #{tpu_custom_call.1} parent=1 // pred_fallthru
      _
    // Predicated region
    $region22: #{tpu_custom_call.1} parent=1 // pred_check
      _
    $region23: #{tpu_custom_call.1} parent=1 // pred_check_branch
      %24 = sbr.rel (0) target = $region25
    $region24: #{tpu_custom_call.1} parent=1 // pred_region
      _
    $region25: #{tpu_custom_call.1} parent=1 // pred_fallthru
      _
    // Predicated region
    $region26: #{tpu_custom_call.1} parent=1 // pred_check
      _
    $region27: #{tpu_custom_call.1} parent=1 // pred_check_branch
      %26 = sbr.rel (0) target = $region29
    $region28: #{tpu_custom_call.1} parent=1 // pred_region
      _
    $region29: #{tpu_custom_call.1} parent=1 // pred_fallthru
      _
    %v28 = vld [vmem:[%s0] sm:$0xf]
    %v29 = vld [vmem:[%s0 + $0x4] sm:$0xf]
    %v30 = vld [vmem:[%s2] sm:$0xff]
    %v31 = vld [vmem:[%s4] sm:$0xff]
    %v32 = vld [vmem:[%s1] sm:$0x3]
    %v33 = vlaneseq
    %v34 = vshrl.u32 %v33, 7
    %v35 = vsub.s32 0, %v34
    %v36 = vrot.slane %v30, %v35
    %v39 = vunpack.c.l.b16 %v28
    %v40 = vunpack.c.l.b16 %v29
    %v41 = vpack.c.b16 %v40, %v39
    %vm42 = vcmask 31744
    %v44 = vsel %vm42, %v41, 0
    %vm46 = vcmask 1041408
    %v48 = vsel %vm46, %v32, 0
    %50 = vmatprep.subr.bf16.mxu0 0
    %51 = vmatpush1.bf16.msra.mxu0 %v48
    %52 = vmatprep.subr.bf16.mxu0 0
    %53 = vmatpush1.bf16.msra.mxu0 0
    %54 = vmatprep.subr.bf16.mxu0 0
    %55 = vmatpush1.bf16.msra.mxu0 0
    %56 = vmatprep.subr.bf16.mxu0 0
    %57 = vmatpush1.bf16.msra.mxu0 0
    %58 = vmatprep.subr.bf16.mxu0 0
    %59 = vmatpush1.bf16.msra.mxu0 0
    %60 = vmatprep.subr.bf16.mxu0 0
    %61 = vmatpush1.bf16.msra.mxu0 0
    %62 = vmatprep.subr.bf16.mxu0 0
    %63 = vmatpush1.bf16.msra.mxu0 0
    %64 = vmatprep.subr.bf16.mxu0 0
    %65 = vmatpush1.bf16.msra.mxu0 0
    %66 = vmatprep.subr.bf16.mxu0 0
    %67 = vmatpush1.bf16.msra.mxu0 0
    %68 = vmatprep.subr.bf16.mxu0 0
    %69 = vmatpush1.bf16.msra.mxu0 0
    %70 = vmatprep.subr.bf16.mxu0 0
    %71 = vmatpush1.bf16.msra.mxu0 0
    %72 = vmatprep.subr.bf16.mxu0 0
    %73 = vmatpush1.bf16.msra.mxu0 0
    %74 = vmatprep.subr.bf16.mxu0 0
    %75 = vmatpush1.bf16.msra.mxu0 0
    %76 = vmatprep.subr.bf16.mxu0 0
    %77 = vmatpush1.bf16.msra.mxu0 0
    %78 = vmatprep.subr.bf16.mxu0 0
    %79 = vmatpush1.bf16.msra.mxu0 0
    %80 = vmatprep.subr.bf16.mxu0 0
    %81 = vmatpush1.bf16.msra.mxu0 0
    %82 = vmatprep.mubr.bf16.mxu0 0
    %83 = vmatmul.mubr.bf16.gmra.mrb[0].mxu0 %v44
    %v84 = vpop.f32.mrb[0].mxu0
    %v85 = vadd.f32 %v36, %v84
    %v86 = vpop.f32.mrb[0].mxu0
    %v87 = vpop.f32.mrb[0].mxu0
    %v88 = vadd.f32 %v36, %v87
    %v89 = vpop.f32.mrb[0].mxu0
    %90 = vdwg.mxu0
    %91 = vadd.xlane.f32.xlu0 %v85
    %v92 = vpop.xlane.xlu0 %91
    %93 = vadd.xlane.f32.xlu0 %v88
    %v94 = vpop.xlane.xlu0 %93
    %v95 = vmul.f32 %v92, 0.03125
    %v96 = vmul.f32 %v94, 0.03125
    %v97 = vmul.f32 %v85, %v85
    %v98 = vmul.f32 %v88, %v88
    %99 = vadd.xlane.f32.xlu0 %v97
    %v100 = vpop.xlane.xlu0 %99
    %101 = vadd.xlane.f32.xlu0 %v98
    %v102 = vpop.xlane.xlu0 %101
    %v103 = vmul.f32 %v100, 0.03125
    %v104 = vmul.f32 %v102, 0.03125
    %v105 = vmul.f32 %v95, %v95
    %v106 = vmul.f32 %v96, %v96
    %v107 = vsub.f32 %v103, %v105
    %v108 = vsub.f32 %v104, %v106
    %v109 = vadd.f32 %v107, 1e-05
    %v110 = vadd.f32 %v108, 1e-05
    %v111 = vrsqrt.pop %v109
    %v112 = vrsqrt.pop %v110
    %v113 = vsub.f32 %v85, %v95
    %v114 = vsub.f32 %v88, %v96
    %v115 = vmul.f32 %v113, %v111
    %v116 = vmul.f32 %v114, %v112
    %v117 = vlaneseq
    %v118 = vshrl.u32 %v117, 7
    %v119 = vsub.s32 1, %v118
    %v120 = vrot.slane %v30, %v119
    %v121 = vmul.f32 %v115, %v120
    %v122 = vmul.f32 %v116, %v120
    %v123 = vlaneseq
    %v124 = vshrl.u32 %v123, 7
    %v125 = vsub.s32 2, %v124
    %v126 = vrot.slane %v30, %v125
    %v127 = vadd.f32 %v121, %v126
    %v128 = vadd.f32 %v122, %v126
    %v129 = vmax.f32 %v127, 0.0
    %v130 = vmax.f32 %v128, 0.0
    %v131 = vpack.c.bf16 %v130, %v129
    %v132 = vld [vmem:[%s3] sm:$0xf]
    %v133 = vld [vmem:[%s3 + $0x4] sm:$0xf]
    %v134 = vld [vmem:[%s3 + $0x8] sm:$0xf]
    %v135 = vld [vmem:[%s3 + $0xc] sm:$0xf]
    %v136 = vld [vmem:[%s3 + $0x10] sm:$0xf]
    %v137 = vld [vmem:[%s3 + $0x14] sm:$0xf]
    %v138 = vld [vmem:[%s3 + $0x18] sm:$0xf]
    %v139 = vld [vmem:[%s3 + $0x1c] sm:$0xf]
    %v140 = vld [vmem:[%s3 + $0x20] sm:$0xf]
    %v141 = vld [vmem:[%s3 + $0x24] sm:$0xf]
    %v142 = vld [vmem:[%s3 + $0x28] sm:$0xf]
    %v143 = vld [vmem:[%s3 + $0x2c] sm:$0xf]
    %v144 = vld [vmem:[%s3 + $0x30] sm:$0xf]
    %v145 = vld [vmem:[%s3 + $0x34] sm:$0xf]
    %v146 = vld [vmem:[%s3 + $0x38] sm:$0xf]
    %v147 = vld [vmem:[%s3 + $0x3c] sm:$0xf]
    %v148 = vlaneseq
    %v149 = vshrl.u32 %v148, 7
    %v150 = vsub.s32 0, %v149
    %v151 = vrot.slane %v31, %v150
    %v168 = vunpack.c.l.b16 %v132
    %v169 = vunpack.c.l.b16 %v133
    %v170 = vunpack.c.l.b16 %v134
    %v171 = vunpack.c.l.b16 %v135
    %v172 = vunpack.c.l.b16 %v136
    %v173 = vunpack.c.l.b16 %v137
    %v174 = vunpack.c.l.b16 %v138
    %v175 = vunpack.c.l.b16 %v139
    %v176 = vunpack.c.l.b16 %v140
    %v177 = vunpack.c.l.b16 %v141
    %v178 = vunpack.c.l.b16 %v142
    %v179 = vunpack.c.l.b16 %v143
    %v180 = vunpack.c.l.b16 %v144
    %v181 = vunpack.c.l.b16 %v145
    %v182 = vunpack.c.l.b16 %v146
    %v183 = vunpack.c.l.b16 %v147
    %v184 = vpack.c.b16 %v169, %v168
    %v185 = vpack.c.b16 %v171, %v170
    %v186 = vpack.c.b16 %v173, %v172
    %v187 = vpack.c.b16 %v175, %v174
    %v188 = vpack.c.b16 %v177, %v176
    %v189 = vpack.c.b16 %v179, %v178
    %v190 = vpack.c.b16 %v181, %v180
    %v191 = vpack.c.b16 %v183, %v182
    %200 = vmatprep.subr.bf16.mxu0 0
    %201 = vmatpush1.bf16.msra.mxu0 %v184
    %202 = vmatprep.subr.bf16.mxu0 0
    %203 = vmatpush1.bf16.msra.mxu0 %v185
    %204 = vmatprep.subr.bf16.mxu0 0
    %205 = vmatpush1.bf16.msra.mxu0 %v186
    %206 = vmatprep.subr.bf16.mxu0 0
    %207 = vmatpush1.bf16.msra.mxu0 %v187
    %208 = vmatprep.subr.bf16.mxu0 0
    %209 = vmatpush1.bf16.msra.mxu0 %v188
    %210 = vmatprep.subr.bf16.mxu0 0
    %211 = vmatpush1.bf16.msra.mxu0 %v189
    %212 = vmatprep.subr.bf16.mxu0 0
    %213 = vmatpush1.bf16.msra.mxu0 %v190
    %214 = vmatprep.subr.bf16.mxu0 0
    %215 = vmatpush1.bf16.msra.mxu0 %v191
    %216 = vmatprep.subr.bf16.mxu0 0
    %217 = vmatpush1.bf16.msra.mxu0 0
    %218 = vmatprep.subr.bf16.mxu0 0
    %219 = vmatpush1.bf16.msra.mxu0 0
    %220 = vmatprep.subr.bf16.mxu0 0
    %221 = vmatpush1.bf16.msra.mxu0 0
    %222 = vmatprep.subr.bf16.mxu0 0
    %223 = vmatpush1.bf16.msra.mxu0 0
    %224 = vmatprep.subr.bf16.mxu0 0
    %225 = vmatpush1.bf16.msra.mxu0 0
    %226 = vmatprep.subr.bf16.mxu0 0
    %227 = vmatpush1.bf16.msra.mxu0 0
    %228 = vmatprep.subr.bf16.mxu0 0
    %229 = vmatpush1.bf16.msra.mxu0 0
    %230 = vmatprep.subr.bf16.mxu0 0
    %231 = vmatpush1.bf16.msra.mxu0 0
    %232 = vmatprep.mubr.bf16.mxu0 0
    %233 = vmatmul.mubr.bf16.gmra.mrb[0].mxu0 %v131
    %v234 = vpop.f32.mrb[0].mxu0
    %v235 = vadd.f32 %v151, %v234
    %v236 = vpop.f32.mrb[0].mxu0
    %v237 = vpop.f32.mrb[0].mxu0
    %v238 = vadd.f32 %v151, %v237
    %v239 = vpop.f32.mrb[0].mxu0
    %240 = vdwg.mxu0
    %241 = vadd.xlane.f32.xlu0 %v235
    %v242 = vpop.xlane.xlu0 %241
    %243 = vadd.xlane.f32.xlu0 %v238
    %v244 = vpop.xlane.xlu0 %243
    %v245 = vmul.f32 %v242, 0.03125
    %v246 = vmul.f32 %v244, 0.03125
    %v247 = vmul.f32 %v235, %v235
    %v248 = vmul.f32 %v238, %v238
    %249 = vadd.xlane.f32.xlu0 %v247
    %v250 = vpop.xlane.xlu0 %249
    %251 = vadd.xlane.f32.xlu0 %v248
    %v252 = vpop.xlane.xlu0 %251
    %v253 = vmul.f32 %v250, 0.03125
    %v254 = vmul.f32 %v252, 0.03125
    %v255 = vmul.f32 %v245, %v245
    %v256 = vmul.f32 %v246, %v246
    %v257 = vsub.f32 %v253, %v255
    %v258 = vsub.f32 %v254, %v256
    %v259 = vadd.f32 %v257, 1e-05
    %v260 = vadd.f32 %v258, 1e-05
    %v261 = vrsqrt.pop %v259
    %v262 = vrsqrt.pop %v260
    %v263 = vsub.f32 %v235, %v245
    %v264 = vsub.f32 %v238, %v246
    %v265 = vmul.f32 %v263, %v261
    %v266 = vmul.f32 %v264, %v262
    %v267 = vlaneseq
    %v268 = vshrl.u32 %v267, 7
    %v269 = vsub.s32 1, %v268
    %v270 = vrot.slane %v31, %v269
    %v271 = vmul.f32 %v265, %v270
    %v272 = vmul.f32 %v266, %v270
    %v273 = vlaneseq
    %v274 = vshrl.u32 %v273, 7
    %v275 = vsub.s32 2, %v274
    %v276 = vrot.slane %v31, %v275
    %v277 = vadd.f32 %v271, %v276
    %v278 = vadd.f32 %v272, %v276
    %v279 = vmax.f32 %v277, 0.0
    %v280 = vmax.f32 %v278, 0.0
    %v281 = vpack.c.bf16 %v280, %v279
    %v282 = vld [vmem:[%s5] sm:$0xf]
    %v283 = vld [vmem:[%s5 + $0x4] sm:$0xf]
    %v284 = vld [vmem:[%s5 + $0x8] sm:$0xf]
    %v285 = vld [vmem:[%s5 + $0xc] sm:$0xf]
    %v286 = vld [vmem:[%s5 + $0x10] sm:$0xf]
    %v287 = vld [vmem:[%s5 + $0x14] sm:$0xf]
    %v288 = vld [vmem:[%s5 + $0x18] sm:$0xf]
    %v289 = vld [vmem:[%s5 + $0x1c] sm:$0xf]
    %v290 = vld [vmem:[%s5 + $0x20] sm:$0xf]
    %v291 = vld [vmem:[%s5 + $0x24] sm:$0xf]
    %v292 = vld [vmem:[%s5 + $0x28] sm:$0xf]
    %v293 = vld [vmem:[%s5 + $0x2c] sm:$0xf]
    %v294 = vld [vmem:[%s5 + $0x30] sm:$0xf]
    %v295 = vld [vmem:[%s5 + $0x34] sm:$0xf]
    %v296 = vld [vmem:[%s5 + $0x38] sm:$0xf]
    %v297 = vld [vmem:[%s5 + $0x3c] sm:$0xf]
    %v298 = vld [vmem:[%s6] sm:$0x1]
    %v300 = vlaneseq
    %v301 = vshrl.u32 %v300, 7
    %v302 = vsub.s32 0, %v301
    %v303 = vrot.slane %v298, %v302
    %v321 = vunpack.c.l.b16 %v282
    %v322 = vunpack.c.l.b16 %v283
    %v323 = vunpack.c.l.b16 %v284
    %v324 = vunpack.c.l.b16 %v285
    %v325 = vunpack.c.l.b16 %v286
    %v326 = vunpack.c.l.b16 %v287
    %v327 = vunpack.c.l.b16 %v288
    %v328 = vunpack.c.l.b16 %v289
    %v329 = vunpack.c.l.b16 %v290
    %v330 = vunpack.c.l.b16 %v291
    %v331 = vunpack.c.l.b16 %v292
    %v332 = vunpack.c.l.b16 %v293
    %v333 = vunpack.c.l.b16 %v294
    %v334 = vunpack.c.l.b16 %v295
    %v335 = vunpack.c.l.b16 %v296
    %v336 = vunpack.c.l.b16 %v297
    %v337 = vpack.c.b16 %v322, %v321
    %v338 = vpack.c.b16 %v324, %v323
    %v339 = vpack.c.b16 %v326, %v325
    %v340 = vpack.c.b16 %v328, %v327
    %v341 = vpack.c.b16 %v330, %v329
    %v342 = vpack.c.b16 %v332, %v331
    %v343 = vpack.c.b16 %v334, %v333
    %v344 = vpack.c.b16 %v336, %v335
    %353 = vmatprep.subr.bf16.mxu0 0
    %354 = vmatpush1.bf16.msra.mxu0 %v337
    %355 = vmatprep.subr.bf16.mxu0 0
    %356 = vmatpush1.bf16.msra.mxu0 %v338
    %357 = vmatprep.subr.bf16.mxu0 0
    %358 = vmatpush1.bf16.msra.mxu0 %v339
    %359 = vmatprep.subr.bf16.mxu0 0
    %360 = vmatpush1.bf16.msra.mxu0 %v340
    %361 = vmatprep.subr.bf16.mxu0 0
    %362 = vmatpush1.bf16.msra.mxu0 %v341
    %363 = vmatprep.subr.bf16.mxu0 0
    %364 = vmatpush1.bf16.msra.mxu0 %v342
    %365 = vmatprep.subr.bf16.mxu0 0
    %366 = vmatpush1.bf16.msra.mxu0 %v343
    %367 = vmatprep.subr.bf16.mxu0 0
    %368 = vmatpush1.bf16.msra.mxu0 %v344
    %369 = vmatprep.subr.bf16.mxu0 0
    %370 = vmatpush1.bf16.msra.mxu0 0
    %371 = vmatprep.subr.bf16.mxu0 0
    %372 = vmatpush1.bf16.msra.mxu0 0
    %373 = vmatprep.subr.bf16.mxu0 0
    %374 = vmatpush1.bf16.msra.mxu0 0
    %375 = vmatprep.subr.bf16.mxu0 0
    %376 = vmatpush1.bf16.msra.mxu0 0
    %377 = vmatprep.subr.bf16.mxu0 0
    %378 = vmatpush1.bf16.msra.mxu0 0
    %379 = vmatprep.subr.bf16.mxu0 0
    %380 = vmatpush1.bf16.msra.mxu0 0
    %381 = vmatprep.subr.bf16.mxu0 0
    %382 = vmatpush1.bf16.msra.mxu0 0
    %383 = vmatprep.subr.bf16.mxu0 0
    %384 = vmatpush1.bf16.msra.mxu0 0
    %385 = vmatprep.mubr.bf16.mxu0 0
    %386 = vmatmul.mubr.bf16.gmra.mrb[0].mxu0 %v281
    %v387 = vpop.f32.mrb[0].mxu0
    %v388 = vadd.f32 %v303, %v387
    %v389 = vpop.f32.mrb[0].mxu0
    %v390 = vpop.f32.mrb[0].mxu0
    %v391 = vadd.f32 %v303, %v390
    %v392 = vpop.f32.mrb[0].mxu0
    %393 = vdwg.mxu0
    %vm394 = vcmask 130048
    %395 = vst.msk [vmem:[#allocation2] sm:$0xff] %vm394, %v388
    %396 = vst.msk [vmem:[#allocation2 + $0x8] sm:$0xff] %vm394, %v391
    // Predicated region
    $region30: #{tpu_custom_call.1} parent=1 // pred_check
      _
    $region31: #{tpu_custom_call.1} parent=1 // pred_check_branch
      %398 = sbr.rel (0) target = $region33
    $region32: #{tpu_custom_call.1} parent=1 // pred_region
      %s400 = ssub.s32 256, 256
      %401 = vsyncadd [#allocation3], %s400
      %s402 = sshll.u32 [#allocation2], 4
      %s403 = int_to_ptr.vmem [resolvable:$true] %s402
      %408 = dma.vmem_to_hbm [thread:$0]  %s403, 256, %s7, [#allocation3], 128, 128, 8
    $region33: #{tpu_custom_call.1} parent=1 // pred_fallthru
      _
    // Predicated region
    $region34: #{tpu_custom_call.1} parent=1 // pred_check
      _
    $region35: #{tpu_custom_call.1} parent=1 // pred_check_branch
      %410 = sbr.rel (0) target = $region37
    $region36: #{tpu_custom_call.1} parent=1 // pred_region
      %411 = dma.done [#allocation3], 256
    $region37: #{tpu_custom_call.1} parent=1 // pred_fallthru
      _
    %412 = vsyncpa [#allocation3], 1

</llo_original>
